<compile_context>
chip_gen: v7x
topology: tpu7x:2x2x1
jax: 0.10.0
libtpu: 0.0.40
codegen_flags: <defaults>
</compile_context>

<pallas_src>
import math
from functools import partial

import jax
import jax.numpy as jnp
from jax.experimental import pallas as pl
from jax.experimental.pallas import tpu as pltpu

LN_EPS = 1e-6
NEG_INF = -1e18
VMEM_LIMIT = 48 * 1024 * 1024  # headroom under v7x's 64 MiB physical VMEM


# ----------------------------- helpers -----------------------------

def _ln_f32(x, g, b):
    mu = jnp.mean(x, axis=-1, keepdims=True)
    var = jnp.mean((x - mu) ** 2, axis=-1, keepdims=True)
    return (x - mu) * jax.lax.rsqrt(var + LN_EPS) * g + b


def _seq_tile(n):
    """(tile, padded_n) for a sequence-length axis. Prefers 256 (v6e/v7x MXU width),
    then 128 with padding; tiny demo sizes use a single multiple-of-8 block."""
    if n >= 256 and n % 256 == 0:
        return 256, n
    if n >= 128:
        return 128, ((n + 127) // 128) * 128
    t = max(8, ((n + 7) // 8) * 8)
    return t, t


def _feature_tile(n, target):
    """(tile, padded_n) for d_ff / vocab axes (lane-dense, multiple of 128 when large)."""
    if n >= target:
        return target, ((n + target - 1) // target) * target
    if n >= 128:
        return 128, ((n + 127) // 128) * 128
    return n, n


def _pad_dim(x, axis, new_size, value=0):
    pad = new_size - x.shape[axis]
    if pad == 0:
        return x
    widths = [(0, 0)] * x.ndim
    widths[axis] = (0, pad)
    return jnp.pad(x, widths, constant_values=value)


# ----------------------------- fused LN + projection (Q/K/V) -----------------------------

def _ln_split_proj_kernel(x_ref, g_ref, b_ref, w_ref, *out_refs,
                          apply_ln, scale_first, d, dh):
    x = x_ref[0].astype(jnp.float32)                       # (TL, D)
    if apply_ln:
        x = _ln_f32(x, g_ref[...].astype(jnp.float32), b_ref[...].astype(jnp.float32))
    y = jnp.dot(x.astype(jnp.bfloat16), w_ref[...],
                preferred_element_type=jnp.float32)        # (TL, n*D)
    for i, o_ref in enumerate(out_refs):
        part = y[:, i * d:(i + 1) * d]
        if i == 0 and scale_first:                         # pre-scale Q by 1/sqrt(d_k)
            part = part * (1.0 / math.sqrt(dh))
        o_ref[0] = part.astype(o_ref.dtype)


def ln_split_projection(x, g, b, w, *, n_out, apply_ln, scale_first, dh, tl):
    B, Lp, D = x.shape
    kernel = partial(_ln_split_proj_kernel, apply_ln=apply_ln,
                     scale_first=scale_first, d=D, dh=dh)
    outs = pl.pallas_call(
        kernel,
        out_shape=tuple(jax.ShapeDtypeStruct((B, Lp, D), jnp.bfloat16)
                        for _ in range(n_out)),
        grid=(B, Lp // tl),
        in_specs=[
            pl.BlockSpec((1, tl, D), lambda bb, ll: (bb, ll, 0)),
            pl.BlockSpec((1, D), lambda bb, ll: (0, 0)),
            pl.BlockSpec((1, D), lambda bb, ll: (0, 0)),
            pl.BlockSpec((D, n_out * D), lambda bb, ll: (0, 0)),
        ],
        out_specs=tuple(pl.BlockSpec((1, tl, D), lambda bb, ll: (bb, ll, 0))
                        for _ in range(n_out)),
        compiler_params=pltpu.CompilerParams(
            dimension_semantics=("parallel", "parallel"),
            vmem_limit_bytes=VMEM_LIMIT),
    )(x, g.reshape(1, D), b.reshape(1, D), w)
    return tuple(outs)


# ----------------------------- flash self-attention -----------------------------

def _flash_self_kernel(resid_ref, q_ref, k_ref, v_ref, kpad_ref, wo_ref, o_ref,
                       m_sc, l_sc, acc_sc, *, n_heads, dh, tq, tk):
    qi = pl.program_id(1)
    ki = pl.program_id(2)

    @pl.when(ki == 0)
    def _():
        m_sc[...] = jnp.full(m_sc.shape, NEG_INF, m_sc.dtype)
        l_sc[...] = jnp.zeros(l_sc.shape, l_sc.dtype)
        acc_sc[...] = jnp.zeros(acc_sc.shape, acc_sc.dtype)

    # kv blocks strictly above the causal diagonal contribute nothing -> skip them.
    @pl.when(ki * tk <= qi * tq + (tq - 1))
    def _():
        q = jnp.transpose(q_ref[0].reshape(tq, n_heads, dh), (1, 0, 2))   # (H,TQ,Dh) bf16
        k = jnp.transpose(k_ref[0].reshape(tk, n_heads, dh), (1, 0, 2))
        v = jnp.transpose(v_ref[0].reshape(tk, n_heads, dh), (1, 0, 2))
        s = jnp.einsum('hqd,hkd->hqk', q, k,
                       preferred_element_type=jnp.float32)                # (H,TQ,TK)
        row = qi * tq + jax.lax.broadcasted_iota(jnp.int32, (tq, tk), 0)
        col = ki * tk + jax.lax.broadcasted_iota(jnp.int32, (tq, tk), 1)
        masked = jnp.logical_or(col > row, kpad_ref[0] > 0)               # causal | key-pad
        s = jnp.where(masked[None, :, :], NEG_INF, s)

        m_prev = m_sc[...]
        m_new = jnp.maximum(m_prev, jnp.max(s, axis=-1, keepdims=True))
        alpha = jnp.exp(m_prev - m_new)
        p = jnp.exp(s - m_new)
        l_sc[...] = alpha * l_sc[...] + jnp.sum(p, axis=-1, keepdims=True)
        acc_sc[...] = alpha * acc_sc[...] + jnp.einsum(
            'hqk,hkd->hqd', p.astype(jnp.bfloat16), v,
            preferred_element_type=jnp.float32)
        m_sc[...] = m_new

    @pl.when(ki == pl.num_programs(2) - 1)
    def _():
        ctx = acc_sc[...] * pl.reciprocal(l_sc[...], approx=True)         # (H,TQ,Dh)
        ctx = jnp.transpose(ctx, (1, 0, 2)).reshape(tq, n_heads * dh).astype(jnp.bfloat16)
        out = jnp.dot(ctx, wo_ref[...], preferred_element_type=jnp.float32)
        o_ref[0] = (resid_ref[0].astype(jnp.float32) + out).astype(o_ref.dtype)


def flash_self_attention(resid, q, k, v, kpad, wo, n_heads, tq, tk):
    B, Lp, D = resid.shape
    dh = D // n_heads
    kernel = partial(_flash_self_kernel, n_heads=n_heads, dh=dh, tq=tq, tk=tk)
    return pl.pallas_call(
        kernel,
        out_shape=jax.ShapeDtypeStruct((B, Lp, D), jnp.bfloat16),
        grid=(B, Lp // tq, Lp // tk),
        in_specs=[
            pl.BlockSpec((1, tq, D), lambda b, qi, ki: (b, qi, 0)),   # residual
            pl.BlockSpec((1, tq, D), lambda b, qi, ki: (b, qi, 0)),   # q
            pl.BlockSpec((1, tk, D), lambda b, qi, ki: (b, ki, 0)),   # k
            pl.BlockSpec((1, tk, D), lambda b, qi, ki: (b, ki, 0)),   # v
            pl.BlockSpec((1, 1, tk), lambda b, qi, ki: (b, 0, ki)),   # key-pad vector
            pl.BlockSpec((D, D), lambda b, qi, ki: (0, 0)),           # out-proj weight
        ],
        out_specs=pl.BlockSpec((1, tq, D), lambda b, qi, ki: (b, qi, 0)),
        scratch_shapes=[
            pltpu.VMEM((n_heads, tq, 1), jnp.float32),    # running max
            pltpu.VMEM((n_heads, tq, 1), jnp.float32),    # running denom
            pltpu.VMEM((n_heads, tq, dh), jnp.float32),   # running context
        ],
        compiler_params=pltpu.CompilerParams(
            dimension_semantics=("parallel", "parallel", "arbitrary"),
            vmem_limit_bytes=VMEM_LIMIT),
    )(resid, q, k, v, kpad, wo)


# ----------------------------- flash enc-dec attention -----------------------------

def _flash_cross_kernel(resid_ref, q_ref, k_ref, v_ref, kpad_ref, wo_ref,
                        o_ref, attn0_ref, m_sc, l_sc, acc_sc, s0_sc,
                        *, n_heads, dh, tq, tk, n_kv):
    ki = pl.program_id(2)

    @pl.when(ki == 0)
    def _():
        m_sc[...] = jnp.full(m_sc.shape, NEG_INF, m_sc.dtype)
        l_sc[...] = jnp.zeros(l_sc.shape, l_sc.dtype)
        acc_sc[...] = jnp.zeros(acc_sc.shape, acc_sc.dtype)

    q = jnp.transpose(q_ref[0].reshape(tq, n_heads, dh), (1, 0, 2))       # (H,TQ,Dh)
    k = jnp.transpose(k_ref[0].reshape(tk, n_heads, dh), (1, 0, 2))
    v = jnp.transpose(v_ref[0].reshape(tk, n_heads, dh), (1, 0, 2))
    s = jnp.einsum('hqd,hkd->hqk', q, k, preferred_element_type=jnp.float32)
    masked = kpad_ref[0] > 0                                              # (1, TK)
    s = jnp.where(masked[None, :, :], NEG_INF, s)
    s0_sc[ki] = s[0]                                                      # head-0 raw scores

    m_prev = m_sc[...]
    m_new = jnp.maximum(m_prev, jnp.max(s, axis=-1, keepdims=True))
    alpha = jnp.exp(m_prev - m_new)
    p = jnp.exp(s - m_new)
    l_sc[...] = alpha * l_sc[...] + jnp.sum(p, axis=-1, keepdims=True)
    acc_sc[...] = alpha * acc_sc[...] + jnp.einsum(
        'hqk,hkd->hqd', p.astype(jnp.bfloat16), v, preferred_element_type=jnp.float32)
    m_sc[...] = m_new

    @pl.when(ki == n_kv - 1)
    def _():
        ctx = acc_sc[...] * pl.reciprocal(l_sc[...], approx=True)
        ctx = jnp.transpose(ctx, (1, 0, 2)).reshape(tq, n_heads * dh).astype(jnp.bfloat16)
        out = jnp.dot(ctx, wo_ref[...], preferred_element_type=jnp.float32)
        o_ref[0] = (resid_ref[0].astype(jnp.float32) + out).astype(o_ref.dtype)
        # head-0 attention map from the stored raw scores and the final m / l
        s0 = jnp.transpose(s0_sc[...], (1, 0, 2)).reshape(tq, n_kv * tk)
        attn0 = jnp.exp(s0 - m_sc[0]) * pl.reciprocal(l_sc[0], approx=True)
        attn0_ref[0] = attn0.astype(attn0_ref.dtype)


def flash_cross_attention(resid, q, k_enc, v_enc, kpad, wo, n_heads, tq, tk):
    B, Lp, D = resid.shape
    L_encp = k_enc.shape[1]
    dh = D // n_heads
    n_kv = L_encp // tk
    kernel = partial(_flash_cross_kernel, n_heads=n_heads, dh=dh,
                     tq=tq, tk=tk, n_kv=n_kv)
    out, attn0 = pl.pallas_call(
        kernel,
        out_shape=(
            jax.ShapeDtypeStruct((B, Lp, D), jnp.bfloat16),
            jax.ShapeDtypeStruct((B, Lp, L_encp), jnp.bfloat16),   # head-0 map, bf16 writeback
        ),
        grid=(B, Lp // tq, n_kv),
        in_specs=[
            pl.BlockSpec((1, tq, D), lambda b, qi, ki: (b, qi, 0)),
            pl.BlockSpec((1, tq, D), lambda b, qi, ki: (b, qi, 0)),
            pl.BlockSpec((1, tk, D), lambda b, qi, ki: (b, ki, 0)),
            pl.BlockSpec((1, tk, D), lambda b, qi, ki: (b, ki, 0)),
            pl.BlockSpec((1, 1, tk), lambda b, qi, ki: (b, 0, ki)),
            pl.BlockSpec((D, D), lambda b, qi, ki: (0, 0)),
        ],
        out_specs=(
            pl.BlockSpec((1, tq, D), lambda b, qi, ki: (b, qi, 0)),
            pl.BlockSpec((1, tq, L_encp), lambda b, qi, ki: (b, qi, 0)),
        ),
        scratch_shapes=[
            pltpu.VMEM((n_heads, tq, 1), jnp.float32),
            pltpu.VMEM((n_heads, tq, 1), jnp.float32),
            pltpu.VMEM((n_heads, tq, dh), jnp.float32),
            pltpu.VMEM((n_kv, tq, tk), jnp.float32),      # head-0 raw scores
        ],
        compiler_params=pltpu.CompilerParams(
            dimension_semantics=("parallel", "parallel", "arbitrary"),
            vmem_limit_bytes=VMEM_LIMIT),
    )(resid, q, k_enc, v_enc, kpad, wo)
    return out, attn0


# ----------------------------- position-wise FFN (d_ff tiled) -----------------------------

def _ffn_kernel(x_ref, g_ref, b_ref, w1_ref, b1_ref, w2_ref, b2_ref, o_ref,
                xn_sc, acc_sc):
    f = pl.program_id(2)

    @pl.when(f == 0)
    def _():
        x = x_ref[0].astype(jnp.float32)
        xn_sc[...] = _ln_f32(x, g_ref[...].astype(jnp.float32),
                             b_ref[...].astype(jnp.float32)).astype(jnp.bfloat16)
        acc_sc[...] = jnp.zeros(acc_sc.shape, acc_sc.dtype)

    h = jnp.dot(xn_sc[...], w1_ref[...], preferred_element_type=jnp.float32) + b1_ref[...]
    h = jnp.maximum(h, 0.0)                                              # ReLU (f32)
    acc_sc[...] += jnp.dot(h.astype(jnp.bfloat16), w2_ref[...],
                           preferred_element_type=jnp.float32)

    @pl.when(f == pl.num_programs(2) - 1)
    def _():
        out = x_ref[0].astype(jnp.float32) + acc_sc[...] + b2_ref[...]
        o_ref[0] = out.astype(o_ref.dtype)


def poswise_ffn(x, g, b, w1, b1, w2, b2, tl):
    B, Lp, D = x.shape
    F = w1.shape[1]
    tf, Fp = _feature_tile(F, 512)
    if Fp != F:
        w1 = _pad_dim(w1, 1, Fp)
        b1 = _pad_dim(b1, 0, Fp)
        w2 = _pad_dim(w2, 0, Fp)
    return pl.pallas_call(
        _ffn_kernel,
        out_shape=jax.ShapeDtypeStruct((B, Lp, D), jnp.bfloat16),
        grid=(B, Lp // tl, Fp // tf),
        in_specs=[
            pl.BlockSpec((1, tl, D), lambda b_, l_, f_: (b_, l_, 0)),
            pl.BlockSpec((1, D), lambda b_, l_, f_: (0, 0)),
            pl.BlockSpec((1, D), lambda b_, l_, f_: (0, 0)),
            pl.BlockSpec((D, tf), lambda b_, l_, f_: (0, f_)),
            pl.BlockSpec((1, tf), lambda b_, l_, f_: (0, f_)),
            pl.BlockSpec((tf, D), lambda b_, l_, f_: (f_, 0)),
            pl.BlockSpec((1, D), lambda b_, l_, f_: (0, 0)),
        ],
        out_specs=pl.BlockSpec((1, tl, D), lambda b_, l_, f_: (b_, l_, 0)),
        scratch_shapes=[
            pltpu.VMEM((tl, D), jnp.bfloat16),   # cached LN(x)
            pltpu.VMEM((tl, D), jnp.float32),    # output accumulator over d_ff tiles
        ],
        compiler_params=pltpu.CompilerParams(
            dimension_semantics=("parallel", "parallel", "arbitrary"),
            vmem_limit_bytes=VMEM_LIMIT),
    )(x, g.reshape(1, D), b.reshape(1, D), w1, b1.reshape(1, Fp), w2, b2.reshape(1, D))


# ----------------------------- final LN + vocab projection -----------------------------

def _lnfc_kernel(x_ref, g_ref, b_ref, w_ref, bias_ref, o_ref, xn_sc):
    @pl.when(pl.program_id(2) == 0)                       # LN computed once per (b, L-tile)
    def _():
        x = x_ref[0].astype(jnp.float32)
        xn_sc[...] = _ln_f32(x, g_ref[...].astype(jnp.float32),
                             b_ref[...].astype(jnp.float32)).astype(jnp.bfloat16)
    y = jnp.dot(xn_sc[...], w_ref[...], preferred_element_type=jnp.float32) + bias_ref[...]
    o_ref[0] = y.astype(o_ref.dtype)


def final_ln_projection(x, g, b, w, bias, tl):
    B, Lp, D = x.shape
    V = w.shape[1]
    tv, Vp = _feature_tile(V, 512)
    if Vp != V:
        w = _pad_dim(w, 1, Vp)
        bias = _pad_dim(bias, 0, Vp)
    return pl.pallas_call(
        _lnfc_kernel,
        out_shape=jax.ShapeDtypeStruct((B, Lp, Vp), jnp.float32),
        grid=(B, Lp // tl, Vp // tv),
        in_specs=[
            pl.BlockSpec((1, tl, D), lambda b_, l_, v_: (b_, l_, 0)),
            pl.BlockSpec((1, D), lambda b_, l_, v_: (0, 0)),
            pl.BlockSpec((1, D), lambda b_, l_, v_: (0, 0)),
            pl.BlockSpec((D, tv), lambda b_, l_, v_: (0, v_)),
            pl.BlockSpec((1, tv), lambda b_, l_, v_: (0, v_)),
        ],
        out_specs=pl.BlockSpec((1, tl, tv), lambda b_, l_, v_: (b_, l_, v_)),
        scratch_shapes=[pltpu.VMEM((tl, D), jnp.bfloat16)],
        compiler_params=pltpu.CompilerParams(
            dimension_semantics=("parallel", "parallel", "arbitrary"),
            vmem_limit_bytes=VMEM_LIMIT),
    )(x, g.reshape(1, D), b.reshape(1, D), w, bias.reshape(1, Vp))


# ----------------------------- parameter setup -----------------------------

def sinusoid_table(n_pos, d_model):
    pos = jnp.arange(n_pos, dtype=jnp.float32)[:, None]
    i = jnp.arange(d_model, dtype=jnp.float32)[None, :]
    angle = pos / jnp.power(10000.0, 2.0 * jnp.floor(i / 2.0) / d_model)
    even = (jnp.arange(d_model) % 2) == 0
    return jnp.where(even[None, :], jnp.sin(angle), jnp.cos(angle)).astype(jnp.float32)


def init_params(key, vocab, d_model, d_ff, n_layers, max_pos):
    keys = jax.random.split(key, 2 + n_layers)
    params = {}
    params["emb"] = (jax.random.normal(keys[0], (vocab, d_model), jnp.float32)
                     * d_model ** (-0.5))
    params["pos"] = sinusoid_table(max_pos, d_model)
    params["final_ln_g"] = jnp.ones((d_model,), jnp.float32)
    params["final_ln_b"] = jnp.zeros((d_model,), jnp.float32)
    # MXU operand weights stored in bf16 (accumulation stays f32 inside kernels)
    params["fc_w"] = (jax.random.normal(keys[1], (d_model, vocab), jnp.float32)
                      * d_model ** (-0.5)).astype(jnp.bfloat16)
    params["fc_b"] = jnp.zeros((vocab,), jnp.float32)

    def xavier(k, shape):
        fan_in, fan_out = shape
        limit = math.sqrt(6.0 / (fan_in + fan_out))
        return jax.random.uniform(k, shape, jnp.float32, -limit, limit).astype(jnp.bfloat16)

    layers = []
    for li in range(n_layers):
        lk = jax.random.split(keys[2 + li], 10)
        layers.append(dict(
            ln1_g=jnp.ones((d_model,), jnp.float32),
            ln1_b=jnp.zeros((d_model,), jnp.float32),
            # fused (D, 3D) self-attention QKV weight (q | k | v)
            sa_wqkv=jnp.concatenate([xavier(lk[0], (d_model, d_model)),
                                     xavier(lk[1], (d_model, d_model)),
                                     xavier(lk[2], (d_model, d_model))], axis=1),
            sa_wo=xavier(lk[3], (d_model, d_model)),
            ln2_g=jnp.ones((d_model,), jnp.float32),
            ln2_b=jnp.zeros((d_model,), jnp.float32),
            ea_wq=xavier(lk[4], (d_model, d_model)),
            # fused (D, 2D) enc-dec K/V weight (k | v)
            ea_wkv=jnp.concatenate([xavier(lk[5], (d_model, d_model)),
                                    xavier(lk[6], (d_model, d_model))], axis=1),
            ea_wo=xavier(lk[7], (d_model, d_model)),
            ffn_ln_g=jnp.ones((d_model,), jnp.float32),
            ffn_ln_b=jnp.zeros((d_model,), jnp.float32),
            w1=xavier(lk[8], (d_model, d_ff)),
            b1=jnp.zeros((d_ff,), jnp.float32),
            w2=xavier(lk[9], (d_ff, d_model)),
            b2=jnp.zeros((d_model,), jnp.float32),
        ))
    params["layers"] = layers
    return params


# ----------------------------- decoder forward -----------------------------

def decoder_forward(tokens, enc_hidden, enc_tokens, params, n_heads, padding_idx):
    B, L0 = tokens.shape
    L_enc0 = enc_tokens.shape[1]
    D = params["emb"].shape[1]
    V = params["fc_w"].shape[1]
    dh = D // n_heads

    tl, Lp = _seq_tile(L0)           # decoder-length tile (q and self-attn kv tile)
    tke, L_encp = _seq_tile(L_enc0)  # encoder-length tile (cross-attn kv tile)

    tokens_p = _pad_dim(tokens, 1, Lp, value=padding_idx)
    enc_tokens_p = _pad_dim(enc_tokens, 1, L_encp, value=padding_idx)
    enc_h = _pad_dim(enc_hidden, 1, L_encp).astype(jnp.bfloat16)

    # embedding * sqrt(d_model) + positional encoding (glue; gathers in plain JAX)
    dec = jnp.take(params["emb"], tokens_p, axis=0) * math.sqrt(D)
    nonpad = (tokens_p != padding_idx).astype(jnp.int32)
    positions = jnp.where(nonpad > 0,
                          padding_idx + jnp.cumsum(nonpad, axis=1),
                          padding_idx)
    positions = jnp.minimum(positions, params["pos"].shape[0] - 1)
    dec = (dec + jnp.take(params["pos"], positions, axis=0)).astype(jnp.bfloat16)

    # 1-D key-pad vectors only; dense (causal+pad) masks are built in-kernel.
    self_kpad = (tokens_p == padding_idx).astype(jnp.int32)[:, None, :]       # (B,1,Lp)
    enc_kpad = (enc_tokens_p == padding_idx).astype(jnp.int32)[:, None, :]    # (B,1,L_encp)

    ones_d = jnp.ones((D,), jnp.float32)    # dummy LN params for the no-LN projection
    zeros_d = jnp.zeros((D,), jnp.float32)

    n_layers = len(params["layers"])
    avg_attn = None
    for lp_ in params["layers"]:
        # ---- self-attention: LN1 + fused QKV once, flash attention + out-proj + residual
        q, k, v = ln_split_projection(dec, lp_["ln1_g"], lp_["ln1_b"], lp_["sa_wqkv"],
                                      n_out=3, apply_ln=True, scale_first=True,
                                      dh=dh, tl=tl)
        dec = flash_self_attention(dec, q, k, v, self_kpad, lp_["sa_wo"],
                                   n_heads, tl, tl)

        # ---- enc-dec attention: LN2 + Q proj; enc K/V projected once per layer
        (qx,) = ln_split_projection(dec, lp_["ln2_g"], lp_["ln2_b"], lp_["ea_wq"],
                                    n_out=1, apply_ln=True, scale_first=True,
                                    dh=dh, tl=tl)
        k_enc, v_enc = ln_split_projection(enc_h, ones_d, zeros_d, lp_["ea_wkv"],
                                           n_out=2, apply_ln=False, scale_first=False,
                                           dh=dh, tl=tke)
        dec, attn0 = flash_cross_attention(dec, qx, k_enc, v_enc, enc_kpad, lp_["ea_wo"],
                                           n_heads, tl, tke)

        # ---- position-wise FFN (d_ff-tiled accumulation)
        dec = poswise_ffn(dec, lp_["ffn_ln_g"], lp_["ffn_ln_b"],
                          lp_["w1"], lp_["b1"], lp_["w2"], lp_["b2"], tl)

        # averaged enc-dec attention of head 0 (matches `top_attn` semantics)
        attn_scores = attn0.astype(jnp.float32) / n_layers
        avg_attn = attn_scores if avg_attn is None else avg_attn + attn_scores

    logits = final_ln_projection(dec, params["final_ln_g"], params["final_ln_b"],
                                 params["fc_w"], params["fc_b"], tl)
    return logits[:, :L0, :V], avg_attn[:, :L0, :L_enc0]


# ----------------------------- main -----------------------------

if __name__ == "__main__":
    B = 2           # batch
    L = 8           # target sequence length
    L_ENC = 8       # source sequence length
    D_MODEL = 32
    D_FF = 64
    N_HEADS = 4     # d_k = d_v = 8
    N_LAYERS = 2
    VOCAB = 16
    PAD = 1
    MAX_POS = 32

    key = jax.random.PRNGKey(0)
    k_tok, k_enc_tok, k_enc_h, k_par = jax.random.split(key, 4)

    tokens = jax.random.randint(k_tok, (B, L), 2, VOCAB, dtype=jnp.int32)
    tokens = tokens.at[0, -1].set(PAD)          # exercise padding mask
    enc_tokens = jax.random.randint(k_enc_tok, (B, L_ENC), 2, VOCAB, dtype=jnp.int32)
    enc_tokens = enc_tokens.at[1, -2:].set(PAD)
    enc_hidden = jax.random.normal(k_enc_h, (B, L_ENC, D_MODEL), jnp.float32)

    params = init_params(k_par, VOCAB, D_MODEL, D_FF, N_LAYERS, MAX_POS)

    logits, avg_attn = decoder_forward(tokens, enc_hidden, enc_tokens, params,
                                       N_HEADS, PAD)
    logits = jax.block_until_ready(logits)
    avg_attn = jax.block_until_ready(avg_attn)

    assert logits.shape == (B, L, VOCAB)
    assert avg_attn.shape == (B, L, L_ENC)
    assert bool(jnp.all(jnp.isfinite(logits)))
    assert bool(jnp.all(jnp.isfinite(avg_attn)))
    print("KERNEL_OK")
</pallas_src>

<mosaic_0001>
module attributes {stable_mosaic.version = 11 : i64} {
  func.func @_ln_split_proj_kernel(%arg0: i32, %arg1: i32, %arg2: memref<1x8x32xbf16, #tpu.memory_space<vmem>>, %arg3: memref<1x32xf32, #tpu.memory_space<vmem>>, %arg4: memref<1x32xf32, #tpu.memory_space<vmem>>, %arg5: memref<32x96xbf16, #tpu.memory_space<vmem>>, %arg6: memref<1x8x32xbf16, #tpu.memory_space<vmem>>, %arg7: memref<1x8x32xbf16, #tpu.memory_space<vmem>>, %arg8: memref<1x8x32xbf16, #tpu.memory_space<vmem>>) attributes {dimension_semantics = [#tpu.dimension_semantics<parallel>, #tpu.dimension_semantics<parallel>], iteration_bounds = array<i64: 2, 1>, scalar_prefetch = 0 : i64, scratch_operands = 0 : i64, tpu.core_type = #tpu.core_type<tc>, window_params = [{transform_indices = @transform_0, window_bounds = array<i64: 1, 8, 32>}, {pipeline_mode = #tpu.pipeline_mode<synchronous>, transform_indices = @transform_1, window_bounds = array<i64: 1, 32>}, {pipeline_mode = #tpu.pipeline_mode<synchronous>, transform_indices = @transform_2, window_bounds = array<i64: 1, 32>}, {pipeline_mode = #tpu.pipeline_mode<synchronous>, transform_indices = @transform_3, window_bounds = array<i64: 32, 96>}, {transform_indices = @transform_4, window_bounds = array<i64: 1, 8, 32>}, {transform_indices = @transform_5, window_bounds = array<i64: 1, 8, 32>}, {transform_indices = @transform_6, window_bounds = array<i64: 1, 8, 32>}]} {
    %c0 = arith.constant 0 : index
    %c0_0 = arith.constant 0 : index
    %c0_1 = arith.constant 0 : index
    %0 = vector.load %arg2[%c0, %c0_0, %c0_1] : memref<1x8x32xbf16, #tpu.memory_space<vmem>>, vector<1x8x32xbf16>
    %1 = vector.shape_cast %0 : vector<1x8x32xbf16> to vector<8x32xbf16>
    %2 = arith.extf %1 : vector<8x32xbf16> to vector<8x32xf32>
    %c0_2 = arith.constant 0 : index
    %c0_3 = arith.constant 0 : index
    %3 = vector.load %arg3[%c0_2, %c0_3] : memref<1x32xf32, #tpu.memory_space<vmem>>, vector<1x32xf32>
    %c0_4 = arith.constant 0 : index
    %c0_5 = arith.constant 0 : index
    %4 = vector.load %arg4[%c0_4, %c0_5] : memref<1x32xf32, #tpu.memory_space<vmem>>, vector<1x32xf32>
    %cst = arith.constant dense<0.000000e+00> : vector<8xf32>
    %5 = vector.multi_reduction <add>, %2, %cst [1] : vector<8x32xf32> to vector<8xf32>
    %6 = vector.shape_cast %5 : vector<8xf32> to vector<8x1xf32>
    %cst_6 = arith.constant 3.200000e+01 : f32
    %7 = vector.broadcast %cst_6 : f32 to vector<8x1xf32>
    %8 = arith.divf %6, %7 : vector<8x1xf32>
    %9 = vector.broadcast %8 : vector<8x1xf32> to vector<8x32xf32>
    %10 = arith.subf %2, %9 : vector<8x32xf32>
    %11 = arith.mulf %10, %10 : vector<8x32xf32>
    %cst_7 = arith.constant dense<0.000000e+00> : vector<8xf32>
    %12 = vector.multi_reduction <add>, %11, %cst_7 [1] : vector<8x32xf32> to vector<8xf32>
    %13 = vector.shape_cast %12 : vector<8xf32> to vector<8x1xf32>
    %cst_8 = arith.constant 3.200000e+01 : f32
    %14 = vector.broadcast %cst_8 : f32 to vector<8x1xf32>
    %15 = arith.divf %13, %14 : vector<8x1xf32>
    %16 = vector.broadcast %8 : vector<8x1xf32> to vector<8x32xf32>
    %17 = arith.subf %2, %16 : vector<8x32xf32>
    %cst_9 = arith.constant 9.99999997E-7 : f32
    %18 = vector.broadcast %cst_9 : f32 to vector<8x1xf32>
    %19 = arith.addf %15, %18 : vector<8x1xf32>
    %20 = math.rsqrt %19 : vector<8x1xf32>
    %21 = vector.broadcast %20 : vector<8x1xf32> to vector<8x32xf32>
    %22 = arith.mulf %17, %21 : vector<8x32xf32>
    %23 = vector.broadcast %3 : vector<1x32xf32> to vector<8x32xf32>
    %24 = arith.mulf %22, %23 : vector<8x32xf32>
    %25 = vector.broadcast %4 : vector<1x32xf32> to vector<8x32xf32>
    %26 = arith.addf %24, %25 : vector<8x32xf32>
    %27 = arith.truncf %26 : vector<8x32xf32> to vector<8x32xbf16>
    %c0_10 = arith.constant 0 : index
    %c0_11 = arith.constant 0 : index
    %28 = vector.load %arg5[%c0_10, %c0_11] : memref<32x96xbf16, #tpu.memory_space<vmem>>, vector<32x96xbf16>
    %cst_12 = arith.constant dense<0.000000e+00> : vector<8x96xf32>
    %29 = tpu.matmul %27, %28, %cst_12 {dimension_numbers = #tpu.dot_dimension_numbers<[1], [0], [0], [1], [0, 0, 1, 1], [], []>} : vector<8x32xbf16>, vector<32x96xbf16>, vector<8x96xf32> -> vector<8x96xf32>
    %30 = vector.extract_strided_slice %29 {offsets = [0, 0], sizes = [8, 32], strides = [1, 1]} : vector<8x96xf32> to vector<8x32xf32>
    %cst_13 = arith.constant 0.353553385 : f32
    %31 = vector.broadcast %cst_13 : f32 to vector<8x32xf32>
    %32 = arith.mulf %30, %31 : vector<8x32xf32>
    %33 = arith.truncf %32 : vector<8x32xf32> to vector<8x32xbf16>
    %c0_14 = arith.constant 0 : index
    %c0_15 = arith.constant 0 : index
    %c0_16 = arith.constant 0 : index
    %34 = vector.load %arg6[%c0_14, %c0_15, %c0_16] : memref<1x8x32xbf16, #tpu.memory_space<vmem>>, vector<1x8x32xbf16>
    %35 = vector.shape_cast %34 : vector<1x8x32xbf16> to vector<8x32xbf16>
    %36 = vector.shape_cast %33 : vector<8x32xbf16> to vector<1x8x32xbf16>
    tpu.vector_store %arg6[%c0_14, %c0_15, %c0_16], %36 {strides = array<i32>} : memref<1x8x32xbf16, #tpu.memory_space<vmem>>, vector<1x8x32xbf16>,
    %37 = vector.extract_strided_slice %29 {offsets = [0, 32], sizes = [8, 32], strides = [1, 1]} : vector<8x96xf32> to vector<8x32xf32>
    %38 = arith.truncf %37 : vector<8x32xf32> to vector<8x32xbf16>
    %c0_17 = arith.constant 0 : index
    %c0_18 = arith.constant 0 : index
    %c0_19 = arith.constant 0 : index
    %39 = vector.load %arg7[%c0_17, %c0_18, %c0_19] : memref<1x8x32xbf16, #tpu.memory_space<vmem>>, vector<1x8x32xbf16>
    %40 = vector.shape_cast %39 : vector<1x8x32xbf16> to vector<8x32xbf16>
    %41 = vector.shape_cast %38 : vector<8x32xbf16> to vector<1x8x32xbf16>
    tpu.vector_store %arg7[%c0_17, %c0_18, %c0_19], %41 {strides = array<i32>} : memref<1x8x32xbf16, #tpu.memory_space<vmem>>, vector<1x8x32xbf16>,
    %42 = vector.extract_strided_slice %29 {offsets = [0, 64], sizes = [8, 32], strides = [1, 1]} : vector<8x96xf32> to vector<8x32xf32>
    %43 = arith.truncf %42 : vector<8x32xf32> to vector<8x32xbf16>
    %c0_20 = arith.constant 0 : index
    %c0_21 = arith.constant 0 : index
    %c0_22 = arith.constant 0 : index
    %44 = vector.load %arg8[%c0_20, %c0_21, %c0_22] : memref<1x8x32xbf16, #tpu.memory_space<vmem>>, vector<1x8x32xbf16>
    %45 = vector.shape_cast %44 : vector<1x8x32xbf16> to vector<8x32xbf16>
    %46 = vector.shape_cast %43 : vector<8x32xbf16> to vector<1x8x32xbf16>
    tpu.vector_store %arg8[%c0_20, %c0_21, %c0_22], %46 {strides = array<i32>} : memref<1x8x32xbf16, #tpu.memory_space<vmem>>, vector<1x8x32xbf16>,
    return
  }
  func.func @transform_0(%arg0: i32, %arg1: i32) -> (i32, i32, i32) {
    %c0_i32 = arith.constant 0 : i32
    %c0_i32_0 = arith.constant 0 : i32
    return %arg0, %arg1, %c0_i32 : i32, i32, i32
  }
  func.func @transform_1(%arg0: i32, %arg1: i32) -> (i32, i32) {
    %c0_i32 = arith.constant 0 : i32
    %c0_i32_0 = arith.constant 0 : i32
    %c0_i32_1 = arith.constant 0 : i32
    return %c0_i32, %c0_i32_0 : i32, i32
  }
  func.func @transform_2(%arg0: i32, %arg1: i32) -> (i32, i32) {
    %c0_i32 = arith.constant 0 : i32
    %c0_i32_0 = arith.constant 0 : i32
    %c0_i32_1 = arith.constant 0 : i32
    return %c0_i32, %c0_i32_0 : i32, i32
  }
  func.func @transform_3(%arg0: i32, %arg1: i32) -> (i32, i32) {
    %c0_i32 = arith.constant 0 : i32
    %c0_i32_0 = arith.constant 0 : i32
    %c0_i32_1 = arith.constant 0 : i32
    return %c0_i32, %c0_i32_0 : i32, i32
  }
  func.func @transform_4(%arg0: i32, %arg1: i32) -> (i32, i32, i32) {
    %c0_i32 = arith.constant 0 : i32
    %c0_i32_0 = arith.constant 0 : i32
    return %arg0, %arg1, %c0_i32 : i32, i32, i32
  }
  func.func @transform_5(%arg0: i32, %arg1: i32) -> (i32, i32, i32) {
    %c0_i32 = arith.constant 0 : i32
    %c0_i32_0 = arith.constant 0 : i32
    return %arg0, %arg1, %c0_i32 : i32, i32, i32
  }
  func.func @transform_6(%arg0: i32, %arg1: i32) -> (i32, i32, i32) {
    %c0_i32 = arith.constant 0 : i32
    %c0_i32_0 = arith.constant 0 : i32
    return %arg0, %arg1, %c0_i32 : i32, i32, i32
  }
}

</mosaic_0001>

<llo_original>
// kernel: tpu_custom_call.1
$region0: #{tpu_custom_call.1}
  #allocation0 [shape = 'u32[]', space=smem, size = 0x4, offset = 0x4, fixed_abs, tag = 'smem constant byte address 0x4 - core index']
  #allocation1 [shape = 'u32[144,128]{1,0:T(1,128)}', space=vmem, size = 0x12000, scoped, tag = 'internal scratch']
  %s0 = inlined_call_operand.hbm [shape: bf16[2,8,32], index: 0, kind: input, shape index: {}]
  %s1 = inlined_call_operand.vmem [shape: f32[1,32], index: 1, kind: input, shape index: {}]
  %s2 = inlined_call_operand.vmem [shape: f32[1,32], index: 2, kind: input, shape index: {}]
  %s3 = inlined_call_operand.hbm [shape: bf16[32,96], index: 3, kind: input, shape index: {}]
  %s4 = inlined_call_operand.hbm [shape: bf16[2,8,32], index: 4, kind: output, shape index: {0}]
  %s5 = inlined_call_operand.hbm [shape: bf16[2,8,32], index: 5, kind: output, shape index: {1}]
  %s6 = inlined_call_operand.hbm [shape: bf16[2,8,32], index: 6, kind: output, shape index: {2}]
  %7 = xla_tuple %s4, %s5, %s6
  %s8 = sld [smem:[#allocation0]]
  $region73: #{tpu_custom_call.1} parent=0
    _
  %s10 = ssub.s32 1, %s8
  %s11 = scalar_select 0, %s10, %s8
  $region1: #{tpu_custom_call.1} parent=0
    #allocation2 [shape = 'u8[4096]{0}', space=vmem, size = 0x1000, scoped, tag = 'input window, operand 0']
    #allocation3 [shape = 's32[2]{0}', space=sflag, size = 0x8, scoped, tag = 'scoped memory for tpu_custom_call.1']
    #allocation4 [shape = 's32[2]{0}', space=sflag, size = 0x8, scoped, tag = 'scoped memory for tpu_custom_call.1']
    #allocation5 [shape = 'u8[8192]{0}', space=vmem, size = 0x2000, scoped, tag = 'input window, operand 3, single buffered']
    #allocation6 [shape = 's32[1]{0}', space=sflag, size = 0x4, scoped, tag = 'scoped memory for tpu_custom_call.1']
    #allocation7 [shape = 'u8[4096]{0}', space=vmem, size = 0x1000, scoped, tag = 'output window, operand 0']
    #allocation8 [shape = 'u8[4096]{0}', space=vmem, size = 0x1000, scoped, tag = 'output window, operand 1']
    #allocation9 [shape = 's32[2]{0}', space=sflag, size = 0x8, scoped, tag = 'scoped memory for tpu_custom_call.1']
    #allocation10 [shape = 'u8[4096]{0}', space=vmem, size = 0x1000, scoped, tag = 'output window, operand 2']
    %12 = vsyncpa [#allocation3], 0
    %s13 = scalar_lea.sflag [#allocation3], 1
    %14 = vsyncpa %s13, 0
    %15 = vsyncpa [#allocation6], 0
    %16 = vsyncpa [#allocation4], 0
    %s17 = scalar_lea.sflag [#allocation4], 1
    %18 = vsyncpa %s17, 0
    %19 = vsyncpa [#allocation9], 0
    %s20 = scalar_lea.sflag [#allocation9], 1
    %21 = vsyncpa %s20, 0
    loop: start=0, step=1, limit=4
    $region2: #{tpu_custom_call.1} parent=1 // loop_pre_header
      _
    $region3: #{tpu_custom_call.1} parent=1 // loop_header
      %s23 = sphi 0, %s27
      %p24 = scmp.ge.s32.totalorder %s23, 4
      %s30 = sphi 0, %s42
      %s31 = sphi 0, %s38
      %s32 = sphi 0, %s30
      %s33 = sphi 0, %s31
      %s34 = sphi 0, %s32
      %s35 = sphi 0, %s33
      %s47 = sphi 0, %s49
      %s50 = sphi 0, %s47
      %s51 = sphi 0, %s50
      %s67 = sphi 0, %s51
      %s71 = sphi 0, %s71
      %s73 = sphi 0, %s71
      %s74 = sphi 0, %s73
      %s88 = sphi 0, %s74
      %s92 = sphi 0, %s92
      %s94 = sphi 0, %s92
      %s95 = sphi 0, %s94
      %s109 = sphi 0, %s95
      %s113 = sphi 0, %s113
      %s115 = sphi 0, %s113
      %s116 = sphi 0, %s115
      %s130 = sphi 0, %s116
      %s138 = sphi 0, %s140
      %s141 = sphi 0, %s138
      %s142 = sphi 0, %s141
      %s158 = sphi 0, %s142
      %s166 = sphi 0, %s168
      %s169 = sphi 0, %s166
      %s170 = sphi 0, %s169
      %s186 = sphi 0, %s170
      %s194 = sphi 0, %s196
      %s197 = sphi 0, %s194
      %s198 = sphi 0, %s197
      %s214 = sphi 0, %s198
    $region4: #{tpu_custom_call.1} parent=1 // loop_header_branch
      %26 = sbr.rel (%p24) target = $region8
    $region5: #{tpu_custom_call.1} parent=1 // loop_body
      %s28 = ssub.s32 %s23, 1
      %s29 = ssub.s32 %s23, 2
      %s36 = sadd.s32 1, %s31
      %p37 = scmp.ge.s32.totalorder %s36, 1
      %s38 = scalar_select %p37, 0, %s36
      %s39 = sadd.s32 1, %s30
      %s40 = scalar_select %p37, %s39, %s30
      %p41 = scmp.ge.s32.totalorder %s40, 2
      %s42 = scalar_select %p41, 0, %s40
      %s43 = ssub.s32 %s30, %s42
      %s44 = ssub.s32 %s31, %s38
      %s45 = sor.u32 %s43, %s44
      %p46 = scmp.eq.s32.totalorder %s45, 0
      %s48 = sadd.s32 %s47, 1
      %s49 = scalar_select %p46, %s47, %s48
      %p52 = pneg %p46
      %p53 = scmp.eq.s32.totalorder %s23, 1
      %p54 = por %p52, %p53
      %p55 = scmp.ne.s32.totalorder %s47, %s50
      %p56 = scmp.eq.s32.totalorder %s23, 0
      %p57 = por %p55, %p56
      %p58 = scmp.ne.s32.totalorder %s47, %s50
      %p59 = scmp.eq.s32.totalorder %s28, 1
      %p60 = por %p58, %p59
      %p61 = scmp.ne.s32.totalorder %s50, %s51
      %p62 = scmp.eq.s32.totalorder %s28, 0
      %p63 = por %p61, %p62
      %p64 = scmp.ne.s32.totalorder %s50, %s51
      %p65 = scmp.eq.s32.totalorder %s29, 1
      %p66 = por %p64, %p65
      %p68 = scmp.ne.s32.totalorder %s51, %s67
      %p69 = scmp.eq.s32.totalorder %s29, 0
      %p70 = por %p68, %p69
      %s72 = sadd.s32 %s71, 1
      %p75 = scmp.eq.s32.totalorder %s23, 1
      %p76 = scmp.ne.s32.totalorder %s71, %s73
      %p77 = scmp.eq.s32.totalorder %s23, 0
      %p78 = por %p76, %p77
      %p79 = scmp.ne.s32.totalorder %s71, %s73
      %p80 = scmp.eq.s32.totalorder %s28, 1
      %p81 = por %p79, %p80
      %p82 = scmp.ne.s32.totalorder %s73, %s74
      %p83 = scmp.eq.s32.totalorder %s28, 0
      %p84 = por %p82, %p83
      %p85 = scmp.ne.s32.totalorder %s73, %s74
      %p86 = scmp.eq.s32.totalorder %s29, 1
      %p87 = por %p85, %p86
      %p89 = scmp.ne.s32.totalorder %s74, %s88
      %p90 = scmp.eq.s32.totalorder %s29, 0
      %p91 = por %p89, %p90
      %s93 = sadd.s32 %s92, 1
      %p96 = scmp.eq.s32.totalorder %s23, 1
      %p97 = scmp.ne.s32.totalorder %s92, %s94
      %p98 = scmp.eq.s32.totalorder %s23, 0
      %p99 = por %p97, %p98
      %p100 = scmp.ne.s32.totalorder %s92, %s94
      %p101 = scmp.eq.s32.totalorder %s28, 1
      %p102 = por %p100, %p101
      %p103 = scmp.ne.s32.totalorder %s94, %s95
      %p104 = scmp.eq.s32.totalorder %s28, 0
      %p105 = por %p103, %p104
      %p106 = scmp.ne.s32.totalorder %s94, %s95
      %p107 = scmp.eq.s32.totalorder %s29, 1
      %p108 = por %p106, %p107
      %p110 = scmp.ne.s32.totalorder %s95, %s109
      %p111 = scmp.eq.s32.totalorder %s29, 0
      %p112 = por %p110, %p111
      %s114 = sadd.s32 %s113, 1
      %p117 = scmp.eq.s32.totalorder %s23, 1
      %p118 = scmp.ne.s32.totalorder %s113, %s115
      %p119 = scmp.eq.s32.totalorder %s23, 0
      %p120 = por %p118, %p119
      %p121 = scmp.ne.s32.totalorder %s113, %s115
      %p122 = scmp.eq.s32.totalorder %s28, 1
      %p123 = por %p121, %p122
      %p124 = scmp.ne.s32.totalorder %s115, %s116
      %p125 = scmp.eq.s32.totalorder %s28, 0
      %p126 = por %p124, %p125
      %p127 = scmp.ne.s32.totalorder %s115, %s116
      %p128 = scmp.eq.s32.totalorder %s29, 1
      %p129 = por %p127, %p128
      %p131 = scmp.ne.s32.totalorder %s116, %s130
      %p132 = scmp.eq.s32.totalorder %s29, 0
      %p133 = por %p131, %p132
      %s134 = ssub.s32 %s30, %s42
      %s135 = ssub.s32 %s31, %s38
      %s136 = sor.u32 %s134, %s135
      %p137 = scmp.eq.s32.totalorder %s136, 0
      %s139 = sadd.s32 %s138, 1
      %s140 = scalar_select %p137, %s138, %s139
      %p143 = pneg %p137
      %p144 = scmp.eq.s32.totalorder %s23, 1
      %p145 = por %p143, %p144
      %p146 = scmp.ne.s32.totalorder %s138, %s141
      %p147 = scmp.eq.s32.totalorder %s23, 0
      %p148 = por %p146, %p147
      %p149 = scmp.ne.s32.totalorder %s138, %s141
      %p150 = scmp.eq.s32.totalorder %s28, 1
      %p151 = por %p149, %p150
      %p152 = scmp.ne.s32.totalorder %s141, %s142
      %p153 = scmp.eq.s32.totalorder %s28, 0
      %p154 = por %p152, %p153
      %p155 = scmp.ne.s32.totalorder %s141, %s142
      %p156 = scmp.eq.s32.totalorder %s29, 1
      %p157 = por %p155, %p156
      %p159 = scmp.ne.s32.totalorder %s142, %s158
      %p160 = scmp.eq.s32.totalorder %s29, 0
      %p161 = por %p159, %p160
      %s162 = ssub.s32 %s30, %s42
      %s163 = ssub.s32 %s31, %s38
      %s164 = sor.u32 %s162, %s163
      %p165 = scmp.eq.s32.totalorder %s164, 0
      %s167 = sadd.s32 %s166, 1
      %s168 = scalar_select %p165, %s166, %s167
      %p171 = pneg %p165
      %p172 = scmp.eq.s32.totalorder %s23, 1
      %p173 = por %p171, %p172
      %p174 = scmp.ne.s32.totalorder %s166, %s169
      %p175 = scmp.eq.s32.totalorder %s23, 0
      %p176 = por %p174, %p175
      %p177 = scmp.ne.s32.totalorder %s166, %s169
      %p178 = scmp.eq.s32.totalorder %s28, 1
      %p179 = por %p177, %p178
      %p180 = scmp.ne.s32.totalorder %s169, %s170
      %p181 = scmp.eq.s32.totalorder %s28, 0
      %p182 = por %p180, %p181
      %p183 = scmp.ne.s32.totalorder %s169, %s170
      %p184 = scmp.eq.s32.totalorder %s29, 1
      %p185 = por %p183, %p184
      %p187 = scmp.ne.s32.totalorder %s170, %s186
      %p188 = scmp.eq.s32.totalorder %s29, 0
      %p189 = por %p187, %p188
      %s190 = ssub.s32 %s30, %s42
      %s191 = ssub.s32 %s31, %s38
      %s192 = sor.u32 %s190, %s191
      %p193 = scmp.eq.s32.totalorder %s192, 0
      %s195 = sadd.s32 %s194, 1
      %s196 = scalar_select %p193, %s194, %s195
      %p199 = pneg %p193
      %p200 = scmp.eq.s32.totalorder %s23, 1
      %p201 = por %p199, %p200
      %p202 = scmp.ne.s32.totalorder %s194, %s197
      %p203 = scmp.eq.s32.totalorder %s23, 0
      %p204 = por %p202, %p203
      %p205 = scmp.ne.s32.totalorder %s194, %s197
      %p206 = scmp.eq.s32.totalorder %s28, 1
      %p207 = por %p205, %p206
      %p208 = scmp.ne.s32.totalorder %s197, %s198
      %p209 = scmp.eq.s32.totalorder %s28, 0
      %p210 = por %p208, %p209
      %p211 = scmp.ne.s32.totalorder %s197, %s198
      %p212 = scmp.eq.s32.totalorder %s29, 1
      %p213 = por %p211, %p212
      %p215 = scmp.ne.s32.totalorder %s198, %s214
      %p216 = scmp.eq.s32.totalorder %s29, 0
      %p217 = por %p215, %p216
      %p218 = scmp.le.s32.totalorder 1, %s23
      %p219 = scmp.lt.s32.totalorder %s23, 3
      %p220 = pnand %p218, %p219
      %p221 = pneg %p220
      // Predicated region
      $region9: #{tpu_custom_call.1} parent=5 // pred_check
        _
      $region10: #{tpu_custom_call.1} parent=5 // pred_check_branch
        %223 = sbr.rel (%p220) target = $region12
      $region11: #{tpu_custom_call.1} parent=5 // pred_region
        %s224 = ssub.s32 %s23, 1
        // Predicated region
        $region13: #{tpu_custom_call.1} parent=11 // pred_check
          %p225 = pneg %p84
        $region14: #{tpu_custom_call.1} parent=11 // pred_check_branch
          %227 = sbr.rel (%p225) target = $region16
        $region15: #{tpu_custom_call.1} parent=11 // pred_region
          _
        $region16: #{tpu_custom_call.1} parent=11 // pred_fallthru
          _
        // Predicated region
        $region17: #{tpu_custom_call.1} parent=11 // pred_check
          %p228 = pneg %p105
        $region18: #{tpu_custom_call.1} parent=11 // pred_check_branch
          %230 = sbr.rel (%p228) target = $region20
        $region19: #{tpu_custom_call.1} parent=11 // pred_region
          _
        $region20: #{tpu_custom_call.1} parent=11 // pred_fallthru
          _
        // Predicated region
        $region21: #{tpu_custom_call.1} parent=11 // pred_check
          %p231 = pneg %p126
        $region22: #{tpu_custom_call.1} parent=11 // pred_check_branch
          %233 = sbr.rel (%p231) target = $region24
        $region23: #{tpu_custom_call.1} parent=11 // pred_region
          %s235 = ssub.s32 256, 256
          %236 = vsyncadd [#allocation6], %s235
          %s237 = sshll.u32 [#allocation5], 4
          %s238 = int_to_ptr.vmem [resolvable:$true] %s237
          %243 = dma.hbm_to_vmem [thread:$0]  %s3, 256, %s238, [#allocation6], 64, 64, 4
        $region24: #{tpu_custom_call.1} parent=11 // pred_fallthru
          _
      $region12: #{tpu_custom_call.1} parent=5 // pred_fallthru
        _
      %p244 = scmp.lt.s32.totalorder %s23, 2
      // Predicated region
      $region25: #{tpu_custom_call.1} parent=5 // pred_check
        %p245 = pneg %p244
      $region26: #{tpu_custom_call.1} parent=5 // pred_check_branch
        %247 = sbr.rel (%p245) target = $region28
      $region27: #{tpu_custom_call.1} parent=5 // pred_region
        // Predicated region
        $region29: #{tpu_custom_call.1} parent=27 // pred_check
          %p248 = pneg %p57
        $region30: #{tpu_custom_call.1} parent=27 // pred_check_branch
          %250 = sbr.rel (%p248) target = $region32
        $region31: #{tpu_custom_call.1} parent=27 // pred_region
          %s251 = sand.u32 %s47, 1
          %s252 = scalar_lea.sflag [#allocation3], %s251
          %s253 = sand.u32 %s47, 1
          %s254 = smul.addr %s253, 4
          %s255 = scalar_lea.vmem [#allocation2], %s254
          %s257 = ssub.s32 64, 64
          %258 = vsyncadd %s252, %s257
          %s259 = sadd.s32 %s31, %s30
          %s260 = smul.addr %s259, 64
          %s261 = scalar_lea.hbm %s0, %s260
          %s263 = sshll.u32 %s255, 4
          %s264 = int_to_ptr.vmem [resolvable:$true] %s263
          %266 = dma.hbm_to_vmem [thread:$0]  %s261, 64, %s264, %s252
        $region32: #{tpu_custom_call.1} parent=27 // pred_fallthru
          _
      $region28: #{tpu_custom_call.1} parent=5 // pred_fallthru
        _
      %p267 = scmp.le.s32.totalorder 1, %s23
      %p268 = scmp.lt.s32.totalorder %s23, 3
      %p269 = pnand %p267, %p268
      %p270 = pneg %p269
      // Predicated region
      $region33: #{tpu_custom_call.1} parent=5 // pred_check
        _
      $region34: #{tpu_custom_call.1} parent=5 // pred_check_branch
        %272 = sbr.rel (%p269) target = $region36
      $region35: #{tpu_custom_call.1} parent=5 // pred_region
        %s273 = ssub.s32 %s23, 1
        %s274 = sand.u32 %s50, 1
        %s275 = scalar_lea.sflag [#allocation3], %s274
        %s276 = sand.u32 %s50, 1
        %s277 = smul.addr %s276, 4
        %s278 = scalar_lea.vmem [#allocation2], %s277
        // Predicated region
        $region37: #{tpu_custom_call.1} parent=35 // pred_check
          %p279 = pneg %p63
        $region38: #{tpu_custom_call.1} parent=35 // pred_check_branch
          %281 = sbr.rel (%p279) target = $region40
        $region39: #{tpu_custom_call.1} parent=35 // pred_region
          %282 = dma.done %s275, 64
        $region40: #{tpu_custom_call.1} parent=35 // pred_fallthru
          _
        // Predicated region
        $region41: #{tpu_custom_call.1} parent=35 // pred_check
          %p283 = pneg %p126
        $region42: #{tpu_custom_call.1} parent=35 // pred_check_branch
          %285 = sbr.rel (%p283) target = $region44
        $region43: #{tpu_custom_call.1} parent=35 // pred_region
          %286 = dma.done [#allocation6], 256
        $region44: #{tpu_custom_call.1} parent=35 // pred_fallthru
          _
        %s287 = sand.u32 %s50, 1
        %s288 = scalar_lea.sflag [#allocation3], %s287
        %s289 = sand.u32 %s50, 1
        %s290 = smul.addr %s289, 4
        %s291 = scalar_lea.vmem [#allocation2], %s290
        %p292 = pneg %p63
        %p293 = pneg %p60
        %p294 = pneg %p84
        %p295 = pneg %p81
        %p296 = pneg %p105
        %p297 = pneg %p102
        %p298 = pneg %p126
        %p299 = pneg %p123
        %p300 = pneg %p154
        %p301 = pneg %p151
        %s302 = sand.u32 %s141, 1
        %s303 = scalar_lea.sflag [#allocation4], %s302
        %s304 = sand.u32 %s141, 1
        %s305 = smul.addr %s304, 4
        %s306 = scalar_lea.vmem [#allocation7], %s305
        %p307 = pneg %p182
        %p308 = pneg %p179
        %s309 = sand.u32 %s28, 1
        %s310 = scalar_lea.sflag [#allocation9], %s309
        %s311 = sand.u32 %s169, 1
        %s312 = smul.addr %s311, 4
        %s313 = scalar_lea.vmem [#allocation8], %s312
        %p314 = pneg %p210
        %p315 = pneg %p207
        %s316 = sand.u32 %s28, 1
        %s317 = scalar_lea.sflag [#allocation9], %s316
        %s318 = sand.u32 %s197, 1
        %s319 = smul.addr %s318, 4
        %s320 = scalar_lea.vmem [#allocation10], %s319
        %v322 = vld [vmem:[%s278] sm:$0xf]
        %v323 = vunpack.c.l.bf16 %v322
        %v324 = vld [vmem:[%s1] sm:$0x1]
        %v325 = vld [vmem:[%s2] sm:$0x1]
        %vm326 = vcmask 261120
        %v327 = vsel %vm326, %v323, 0.0
        %328 = vadd.xlane.f32.xlu0 %v327
        %v329 = vpop.xlane.xlu0 %328
        %v330 = vrcp.pop 32.0
        %v331 = vmul.f32 %v329, %v330
        %v332 = vsub.f32 %v323, %v331
        %v333 = vmul.f32 %v332, %v332
        %v334 = vsel %vm326, %v333, 0.0
        %335 = vadd.xlane.f32.xlu0 %v334
        %v336 = vpop.xlane.xlu0 %335
        %v337 = vmul.f32 %v336, %v330
        %v338 = vadd.f32 %v337, 1e-06
        %v339 = vrsqrt.pop %v338
        %v340 = vmul.f32 %v332, %v339
        %v342 = vlaneseq
        %v343 = vshrl.u32 %v342, 7
        %v344 = vsub.s32 0, %v343
        %v345 = vrot.slane %v324, %v344
        %v347 = vmul.f32 %v340, %v345
        %v349 = vlaneseq
        %v350 = vshrl.u32 %v349, 7
        %v351 = vsub.s32 0, %v350
        %v352 = vrot.slane %v325, %v351
        %v354 = vadd.f32 %v347, %v352
        %v355 = vpack.c.bf16 %v354, %v354
        %v356 = vld [vmem:[#allocation5] sm:$0xf]
        %v357 = vld [vmem:[#allocation5 + $0x4] sm:$0xf]
        %v358 = vld [vmem:[#allocation5 + $0x8] sm:$0xf]
        %v359 = vld [vmem:[#allocation5 + $0xc] sm:$0xf]
        %v364 = vunpack.c.l.b16 %v356
        %v365 = vunpack.c.l.b16 %v357
        %v366 = vunpack.c.l.b16 %v358
        %v367 = vunpack.c.l.b16 %v359
        %v368 = vpack.c.b16 %v365, %v364
        %v369 = vpack.c.b16 %v367, %v366
        %v373 = vsel %vm326, %v355, 0
        %375 = vmatprep.subr.bf16.mxu0 0
        %376 = vmatpush1.bf16.msra.mxu0 %v368
        %377 = vmatprep.subr.bf16.mxu0 0
        %378 = vmatpush1.bf16.msra.mxu0 %v369
        %379 = vmatprep.subr.bf16.mxu0 0
        %380 = vmatpush1.bf16.msra.mxu0 0
        %381 = vmatprep.subr.bf16.mxu0 0
        %382 = vmatpush1.bf16.msra.mxu0 0
        %383 = vmatprep.subr.bf16.mxu0 0
        %384 = vmatpush1.bf16.msra.mxu0 0
        %385 = vmatprep.subr.bf16.mxu0 0
        %386 = vmatpush1.bf16.msra.mxu0 0
        %387 = vmatprep.subr.bf16.mxu0 0
        %388 = vmatpush1.bf16.msra.mxu0 0
        %389 = vmatprep.subr.bf16.mxu0 0
        %390 = vmatpush1.bf16.msra.mxu0 0
        %391 = vmatprep.subr.bf16.mxu0 0
        %392 = vmatpush1.bf16.msra.mxu0 0
        %393 = vmatprep.subr.bf16.mxu0 0
        %394 = vmatpush1.bf16.msra.mxu0 0
        %395 = vmatprep.subr.bf16.mxu0 0
        %396 = vmatpush1.bf16.msra.mxu0 0
        %397 = vmatprep.subr.bf16.mxu0 0
        %398 = vmatpush1.bf16.msra.mxu0 0
        %399 = vmatprep.subr.bf16.mxu0 0
        %400 = vmatpush1.bf16.msra.mxu0 0
        %401 = vmatprep.subr.bf16.mxu0 0
        %402 = vmatpush1.bf16.msra.mxu0 0
        %403 = vmatprep.subr.bf16.mxu0 0
        %404 = vmatpush1.bf16.msra.mxu0 0
        %405 = vmatprep.subr.bf16.mxu0 0
        %406 = vmatpush1.bf16.msra.mxu0 0
        %407 = vmatprep.mubr.bf16.mxu0 0
        %408 = vmatmul.mubr.bf16.gmra.mrb[0].mxu0 %v373
        %v409 = vpop.f32.mrb[0].mxu0
        %v410 = vadd.f32 0.0, %v409
        %v411 = vpop.f32.mrb[0].mxu0
        %v412 = vpop.f32.mrb[0].mxu0
        %v413 = vpop.f32.mrb[0].mxu0
        %414 = vdwg.mxu0
        %v415 = vmul.f32 %v410, 0.35355338
        %v416 = vpack.c.bf16 %v415, %v415
        %vm417 = vcmask 257024
        %418 = vst.msk [vmem:[%s306] sm:$0xf] %vm417, %v416
        %v419 = vpack.c.bf16 %v410, %v410
        %v421 = vunpack.c.l.b16 %v419
        %v422 = vpack.c.b16 %v421, %v421
        %423 = vrot.lane.b32.xlu0 %v422, 96
        %v424 = vpop.permute.xlu0 %423
        %426 = vst.msk [vmem:[%s313] sm:$0xf] %vm417, %v424
        %427 = vrot.lane.b32.xlu0 %v422, 64
        %v428 = vpop.permute.xlu0 %427
        %430 = vst.msk [vmem:[%s320] sm:$0xf] %vm417, %v428
        %s431 = sand.u32 %s141, 1
        %s432 = scalar_lea.sflag [#allocation4], %s431
        %s433 = sand.u32 %s141, 1
        %s434 = smul.addr %s433, 4
        %s435 = scalar_lea.vmem [#allocation7], %s434
        %s436 = sand.u32 %s28, 1
        %s437 = scalar_lea.sflag [#allocation9], %s436
        %s438 = sand.u32 %s169, 1
        %s439 = smul.addr %s438, 4
        %s440 = scalar_lea.vmem [#allocation8], %s439
        %s441 = sand.u32 %s28, 1
        %s442 = scalar_lea.sflag [#allocation9], %s441
        %s443 = sand.u32 %s197, 1
        %s444 = smul.addr %s443, 4
        %s445 = scalar_lea.vmem [#allocation10], %s444
        // Predicated region
        $region45: #{tpu_custom_call.1} parent=35 // pred_check
          %p446 = pneg %p151
        $region46: #{tpu_custom_call.1} parent=35 // pred_check_branch
          %448 = sbr.rel (%p446) target = $region48
        $region47: #{tpu_custom_call.1} parent=35 // pred_region
          %s450 = ssub.s32 64, 64
          %451 = vsyncadd %s432, %s450
          %s452 = sadd.s32 %s33, %s32
          %s453 = smul.addr %s452, 64
          %s454 = scalar_lea.hbm %s4, %s453
          %s456 = sshll.u32 %s435, 4
          %s457 = int_to_ptr.vmem [resolvable:$true] %s456
          %459 = dma.vmem_to_hbm [thread:$0]  %s457, 64, %s454, %s432
        $region48: #{tpu_custom_call.1} parent=35 // pred_fallthru
          _
        // Predicated region
        $region49: #{tpu_custom_call.1} parent=35 // pred_check
          %p460 = pneg %p179
        $region50: #{tpu_custom_call.1} parent=35 // pred_check_branch
          %462 = sbr.rel (%p460) target = $region52
        $region51: #{tpu_custom_call.1} parent=35 // pred_region
          %s464 = ssub.s32 64, 64
          %465 = vsyncadd %s437, %s464
          %s466 = sadd.s32 %s33, %s32
          %s467 = smul.addr %s466, 64
          %s468 = scalar_lea.hbm %s5, %s467
          %s470 = sshll.u32 %s440, 4
          %s471 = int_to_ptr.vmem [resolvable:$true] %s470
          %473 = dma.vmem_to_hbm [thread:$0]  %s471, 64, %s468, %s437
        $region52: #{tpu_custom_call.1} parent=35 // pred_fallthru
          _
        // Predicated region
        $region53: #{tpu_custom_call.1} parent=35 // pred_check
          %p474 = pneg %p207
        $region54: #{tpu_custom_call.1} parent=35 // pred_check_branch
          %476 = sbr.rel (%p474) target = $region56
        $region55: #{tpu_custom_call.1} parent=35 // pred_region
          %s478 = ssub.s32 64, 64
          %479 = vsyncadd %s442, %s478
          %s480 = sadd.s32 %s33, %s32
          %s481 = smul.addr %s480, 64
          %s482 = scalar_lea.hbm %s6, %s481
          %s484 = sshll.u32 %s445, 4
          %s485 = int_to_ptr.vmem [resolvable:$true] %s484
          %487 = dma.vmem_to_hbm [thread:$0]  %s485, 64, %s482, %s442
        $region56: #{tpu_custom_call.1} parent=35 // pred_fallthru
          _
      $region36: #{tpu_custom_call.1} parent=5 // pred_fallthru
        _
      %p488 = scmp.le.s32.totalorder 2, %s23
      // Predicated region
      $region57: #{tpu_custom_call.1} parent=5 // pred_check
        %p489 = pneg %p488
      $region58: #{tpu_custom_call.1} parent=5 // pred_check_branch
        %491 = sbr.rel (%p489) target = $region60
      $region59: #{tpu_custom_call.1} parent=5 // pred_region
        %s492 = ssub.s32 %s23, 2
        // Predicated region
        $region61: #{tpu_custom_call.1} parent=59 // pred_check
          %p493 = pneg %p157
        $region62: #{tpu_custom_call.1} parent=59 // pred_check_branch
          %495 = sbr.rel (%p493) target = $region64
        $region63: #{tpu_custom_call.1} parent=59 // pred_region
          %s496 = sand.u32 %s142, 1
          %s497 = scalar_lea.sflag [#allocation4], %s496
          %s498 = sand.u32 %s142, 1
          %s499 = smul.addr %s498, 4
          %s500 = scalar_lea.vmem [#allocation7], %s499
          %501 = dma.done %s497, 64
        $region64: #{tpu_custom_call.1} parent=59 // pred_fallthru
          _
        // Predicated region
        $region65: #{tpu_custom_call.1} parent=59 // pred_check
          %p502 = pneg %p185
        $region66: #{tpu_custom_call.1} parent=59 // pred_check_branch
          %504 = sbr.rel (%p502) target = $region68
        $region67: #{tpu_custom_call.1} parent=59 // pred_region
          %s505 = sand.u32 %s29, 1
          %s506 = scalar_lea.sflag [#allocation9], %s505
          %s507 = sand.u32 %s170, 1
          %s508 = smul.addr %s507, 4
          %s509 = scalar_lea.vmem [#allocation8], %s508
          %510 = dma.done %s506, 64
        $region68: #{tpu_custom_call.1} parent=59 // pred_fallthru
          _
        // Predicated region
        $region69: #{tpu_custom_call.1} parent=59 // pred_check
          %p511 = pneg %p213
        $region70: #{tpu_custom_call.1} parent=59 // pred_check_branch
          %513 = sbr.rel (%p511) target = $region72
        $region71: #{tpu_custom_call.1} parent=59 // pred_region
          %s514 = sand.u32 %s29, 1
          %s515 = scalar_lea.sflag [#allocation9], %s514
          %s516 = sand.u32 %s198, 1
          %s517 = smul.addr %s516, 4
          %s518 = scalar_lea.vmem [#allocation10], %s517
          %519 = dma.done %s515, 64
        $region72: #{tpu_custom_call.1} parent=59 // pred_fallthru
          _
      $region60: #{tpu_custom_call.1} parent=5 // pred_fallthru
        _
    $region6: #{tpu_custom_call.1} parent=1 // loop_footer
      %s27 = sadd.s32 1, %s23
    $region7: #{tpu_custom_call.1} parent=1 // loop_footer_branch
      %22 = sbr.rel target = $region3
    $region8: #{tpu_custom_call.1} parent=1 // loop_exit
      _
    %520 = vsyncpa [#allocation3], 1
    %s521 = scalar_lea.sflag [#allocation3], 1
    %522 = vsyncpa %s521, 1
    %523 = vsyncpa [#allocation6], 1
    %524 = vsyncpa [#allocation4], 1
    %s525 = scalar_lea.sflag [#allocation4], 1
    %526 = vsyncpa %s525, 1
    %527 = vsyncpa [#allocation9], 1
    %s528 = scalar_lea.sflag [#allocation9], 1
    %529 = vsyncpa %s528, 1

</llo_original>
